<compile_context>
chip_gen: v7x
topology: tpu7x:2x2x1
jax: 0.10.0
libtpu: 0.0.40
codegen_flags: <defaults>
</compile_context>

<pallas_src>
import jax
import jax.numpy as jnp
from jax.experimental import pallas as pl
from jax.experimental.pallas import tpu as pltpu

LANE = 128
SUBLANE = 8


def _round_up(x, m):
    return ((x + m - 1) // m) * m


def gap_forward(boxes_features, params, *, num_temporal_layers,
                row_tile_target=512, k_chunk=1024):
    """Fused forward.

    boxes_features : (B, T, N, Din) float32   (ROI-extracted box features)
    params: w_emb (Din, H), b_emb (H,), w_fc (H * 2**L, A), b_fc (A,)
    Returns {"activities": (B, A) float32}.
    """
    B, T, N, Din = boxes_features.shape
    w_emb, b_emb = params["w_emb"], params["b_emb"]
    w_fc, b_fc = params["w_fc"], params["b_fc"]
    H = w_emb.shape[1]
    A = w_fc.shape[1]
    G = 2 ** num_temporal_layers
    if T % G != 0:
        raise ValueError("num_frames must be divisible by 2**num_temporal_layers")
    assert w_fc.shape[0] == H * G

    HP = _round_up(H, LANE)      # lane-dense hidden
    AP = _round_up(A, LANE)      # lane-dense activities output

    # ---- Din (contraction) tiling: K-axis grid with an f32 accumulator ----
    dk = min(_round_up(Din, LANE), _round_up(k_chunk, LANE))
    Din_p = _round_up(Din, dk)
    nk = Din_p // dk

    # ---- batch tiling: big LHS row tiles, padded batch instead of asserts ----
    rows_per_b = T * N
    tb = max(1, min(B, -(-row_tile_target // rows_per_b)))   # ~512 LHS rows / step
    nb = -(-B // tb)
    B_pad = nb * tb
    R = tb * rows_per_b                   # matmul LHS rows per grid step
    tb_p = _round_up(tb, SUBLANE)         # sublane-aligned per-group row count
    GTB = G * tb_p

    # ---- inputs: bf16, zero-padded, one (1, R, dk) block per grid step ----
    x = boxes_features.astype(jnp.bfloat16)
    x = jnp.pad(x, ((0, B_pad - B), (0, 0), (0, 0), (0, Din_p - Din)))
    x = x.reshape(nb, R, Din_p)

    # ---- weights: lane-padded, bf16 for the MXU, f32 biases ----
    we = jnp.pad(w_emb, ((0, Din_p - Din), (0, HP - H))).astype(jnp.bfloat16)
    be = jnp.pad(b_emb, (0, HP - H)).reshape(1, HP).astype(jnp.float32)
    wf = jnp.pad(w_fc.reshape(G, H, A),
                 ((0, 0), (0, HP - H), (0, AP - A))).astype(jnp.bfloat16)
    bf = jnp.pad(b_fc, (0, AP - A)).reshape(1, AP).astype(jnp.float32)

    # Pooling selector (stacked over groups, block-diagonal over local batch):
    # wg[g*tb_p + bb, r] = 1 iff row r belongs to local batch bb and its frame
    # index t satisfies t % G == g.  Box-mean + temporal-group-mean become one
    # small MXU matmul; the 1/(N * T/G) scale is applied in f32 in the kernel.
    r_idx = jnp.arange(R)
    row_b = r_idx // rows_per_b
    row_g = ((r_idx % rows_per_b) // N) % G
    sel = jnp.arange(GTB)
    sel_g = sel // tb_p
    sel_b = sel % tb_p
    wg = ((row_b[None, :] == sel_b[:, None]) &
          (row_g[None, :] == sel_g[:, None])).astype(jnp.bfloat16)   # (GTB, R)

    inv_scale = 1.0 / float(N * (T // G))

    # TODO(synk): the real Spatial_Temporal_Group_Residual_Module is not defined
    # in the provided source; this kernel implements the shape-faithful stand-in
    # (mean over boxes -> hierarchical temporal concat -> temporal mean).
    def kernel(x_ref, we_ref, be_ref, wg_ref, wf_ref, bf_ref, o_ref, e_acc):
        k = pl.program_id(1)

        @pl.when(k == 0)
        def _():
            e_acc[...] = jnp.zeros_like(e_acc)

        # Partial embedding over this Din chunk, f32 accumulation in VMEM.
        e_acc[...] += jnp.dot(x_ref[0], we_ref[...],
                              preferred_element_type=jnp.float32)

        @pl.when(k == pl.num_programs(1) - 1)
        def _():
            # bias + ReLU (full embedding now accumulated)
            e = jnp.maximum(e_acc[...] + be_ref[...], 0.0).astype(jnp.bfloat16)
            # one stacked pooling matmul: (GTB, R) x (R, HP) -> (GTB, HP)
            pooled = (jnp.dot(wg_ref[...], e,
                              preferred_element_type=jnp.float32) * inv_scale)
            # per-temporal-group fc, accumulated in f32 (static unroll, G small)
            scores = jnp.zeros((tb_p, AP), jnp.float32)
            for j in range(G):                       # sublane-aligned slices
                pj = pooled[j * tb_p:(j + 1) * tb_p, :].astype(jnp.bfloat16)
                scores = scores + jnp.dot(pj, wf_ref[j, :, :],
                                          preferred_element_type=jnp.float32)
            o_ref[0, :, :] = scores[:tb, :] + bf_ref[...]

    out = pl.pallas_call(
        kernel,
        out_shape=jax.ShapeDtypeStruct((nb, tb, AP), jnp.float32),
        grid_spec=pltpu.PrefetchScalarGridSpec(
            num_scalar_prefetch=0,
            grid=(nb, nk),
            in_specs=[
                pl.BlockSpec((1, R, dk), lambda i, k: (i, 0, k)),
                pl.BlockSpec((dk, HP), lambda i, k: (k, 0)),
                pl.BlockSpec((1, HP), lambda i, k: (0, 0)),
                pl.BlockSpec((GTB, R), lambda i, k: (0, 0)),
                pl.BlockSpec((G, HP, AP), lambda i, k: (0, 0, 0)),
                pl.BlockSpec((1, AP), lambda i, k: (0, 0)),
            ],
            out_specs=pl.BlockSpec((1, tb, AP), lambda i, k: (i, 0, 0)),
            scratch_shapes=[pltpu.VMEM((R, HP), jnp.float32)],
        ),
        compiler_params=pltpu.CompilerParams(
            dimension_semantics=("parallel", "arbitrary")),
    )(x, we, be, wg, wf, bf)

    scores = out.reshape(B_pad, AP)[:B, :A]
    return {"activities": scores}


def gap_forward_ref(boxes_features, params, *, num_temporal_layers):
    """Pure-JAX f32 reference of the same forward (for a loose numeric check)."""
    B, T, N, Din = boxes_features.shape
    H = params["w_emb"].shape[1]
    G = 2 ** num_temporal_layers
    e = jnp.maximum(
        boxes_features.reshape(B * T * N, Din) @ params["w_emb"] + params["b_emb"],
        0.0)
    p = e.reshape(B, T, N, H).mean(axis=2)           # mean over boxes
    f = p.reshape(B, T // G, G * H).mean(axis=1)     # hierarchical concat + temporal mean
    return f @ params["w_fc"] + params["b_fc"]


if __name__ == "__main__":
    # Small, shape-consistent config.
    B, T, N = 2, 4, 4                 # batch, num_frames, num_boxes
    D, K = 4, 4                       # emb_features, crop_size[0]  -> Din = D*K*K = 64
    HIDDEN = 32                       # cfg.hidden_size
    NUM_TEMPORAL_LAYERS = 2           # fc input dim = HIDDEN * 2**2 = 128
    NUM_ACTIVITIES = 8
    Din = D * K * K

    key = jax.random.PRNGKey(0)
    k1, k2, k3, k4, k5 = jax.random.split(key, 5)

    # TODO(synk): backbone (MyInception_v3 / VGG / ...) + RoIAlign are external
    # pretrained modules not defined in the snippet; the kernel path starts at
    # the ROI-extracted box features they would produce.
    boxes_features = jax.random.normal(k1, (B, T, N, Din), dtype=jnp.float32)

    params = {
        "w_emb": jax.random.normal(k2, (Din, HIDDEN), dtype=jnp.float32) * 0.05,
        "b_emb": jax.random.normal(k3, (HIDDEN,), dtype=jnp.float32) * 0.01,
        "w_fc": jax.random.normal(
            k4, (HIDDEN * 2 ** NUM_TEMPORAL_LAYERS, NUM_ACTIVITIES),
            dtype=jnp.float32) * 0.05,
        "b_fc": jax.random.normal(k5, (NUM_ACTIVITIES,), dtype=jnp.float32) * 0.01,
    }

    out = gap_forward(boxes_features, params,
                      num_temporal_layers=NUM_TEMPORAL_LAYERS)
    acts = jax.block_until_ready(out["activities"])
    assert acts.shape == (B, NUM_ACTIVITIES)

    ref = gap_forward_ref(boxes_features, params,
                          num_temporal_layers=NUM_TEMPORAL_LAYERS)
    assert jnp.allclose(acts, ref, rtol=5e-2, atol=5e-2), (
        "kernel output diverges from f32 reference beyond bf16 tolerance")

    print("KERNEL_OK")
</pallas_src>

<mosaic_0001>
module attributes {stable_mosaic.version = 11 : i64} {
  func.func @kernel(%arg0: i32, %arg1: i32, %arg2: memref<1x32x128xbf16, #tpu.memory_space<vmem>>, %arg3: memref<128x128xbf16, #tpu.memory_space<vmem>>, %arg4: memref<1x128xf32, #tpu.memory_space<vmem>>, %arg5: memref<32x32xbf16, #tpu.memory_space<vmem>>, %arg6: memref<4x128x128xbf16, #tpu.memory_space<vmem>>, %arg7: memref<1x128xf32, #tpu.memory_space<vmem>>, %arg8: memref<1x2x128xf32, #tpu.memory_space<vmem>>, %arg9: memref<32x128xf32, #tpu.memory_space<vmem>>) attributes {dimension_semantics = [#tpu.dimension_semantics<parallel>, #tpu.dimension_semantics<arbitrary>], iteration_bounds = array<i64: 1, 1>, scalar_prefetch = 0 : i64, scratch_operands = 1 : i64, tpu.core_type = #tpu.core_type<tc>, window_params = [{transform_indices = @transform_0, window_bounds = array<i64: 1, 32, 128>}, {transform_indices = @transform_1, window_bounds = array<i64: 128, 128>}, {pipeline_mode = #tpu.pipeline_mode<synchronous>, transform_indices = @transform_2, window_bounds = array<i64: 1, 128>}, {pipeline_mode = #tpu.pipeline_mode<synchronous>, transform_indices = @transform_3, window_bounds = array<i64: 32, 32>}, {pipeline_mode = #tpu.pipeline_mode<synchronous>, transform_indices = @transform_4, window_bounds = array<i64: 4, 128, 128>}, {pipeline_mode = #tpu.pipeline_mode<synchronous>, transform_indices = @transform_5, window_bounds = array<i64: 1, 128>}, {transform_indices = @transform_6, window_bounds = array<i64: 1, 2, 128>}]} {
    %c0_i32 = arith.constant 0 : i32
    %0 = arith.cmpi eq, %arg1, %c0_i32 : i32
    %1 = arith.extui %0 : i1 to i32
    %c0_i32_0 = arith.constant 0 : i32
    %2 = arith.cmpi ne, %1, %c0_i32_0 : i32
    scf.if %2 {
      %cst_11 = arith.constant 0.000000e+00 : f32
      %13 = vector.broadcast %cst_11 : f32 to vector<32x128xf32>
      %c0_12 = arith.constant 0 : index
      %c0_13 = arith.constant 0 : index
      %14 = vector.load %arg9[%c0_12, %c0_13] : memref<32x128xf32, #tpu.memory_space<vmem>>, vector<32x128xf32>
      tpu.vector_store %arg9[%c0_12, %c0_13], %13 {strides = array<i32>} : memref<32x128xf32, #tpu.memory_space<vmem>>, vector<32x128xf32>,
    } else {
    }
    %c0 = arith.constant 0 : index
    %c0_1 = arith.constant 0 : index
    %3 = vector.load %arg9[%c0, %c0_1] : memref<32x128xf32, #tpu.memory_space<vmem>>, vector<32x128xf32>
    %c0_2 = arith.constant 0 : index
    %c0_3 = arith.constant 0 : index
    %c0_4 = arith.constant 0 : index
    %4 = vector.load %arg2[%c0_2, %c0_3, %c0_4] : memref<1x32x128xbf16, #tpu.memory_space<vmem>>, vector<1x32x128xbf16>
    %5 = vector.shape_cast %4 : vector<1x32x128xbf16> to vector<32x128xbf16>
    %c0_5 = arith.constant 0 : index
    %c0_6 = arith.constant 0 : index
    %6 = vector.load %arg3[%c0_5, %c0_6] : memref<128x128xbf16, #tpu.memory_space<vmem>>, vector<128x128xbf16>
    %cst = arith.constant dense<0.000000e+00> : vector<32x128xf32>
    %7 = tpu.matmul %5, %6, %cst {dimension_numbers = #tpu.dot_dimension_numbers<[1], [0], [0], [1], [0, 0, 1, 1], [], []>} : vector<32x128xbf16>, vector<128x128xbf16>, vector<32x128xf32> -> vector<32x128xf32>
    %8 = arith.addf %3, %7 : vector<32x128xf32>
    %c0_7 = arith.constant 0 : index
    %c0_8 = arith.constant 0 : index
    %9 = vector.load %arg9[%c0_7, %c0_8] : memref<32x128xf32, #tpu.memory_space<vmem>>, vector<32x128xf32>
    tpu.vector_store %arg9[%c0_7, %c0_8], %8 {strides = array<i32>} : memref<32x128xf32, #tpu.memory_space<vmem>>, vector<32x128xf32>,
    %c0_i32_9 = arith.constant 0 : i32
    %10 = arith.cmpi eq, %arg1, %c0_i32_9 : i32
    %11 = arith.extui %10 : i1 to i32
    %c0_i32_10 = arith.constant 0 : i32
    %12 = arith.cmpi ne, %11, %c0_i32_10 : i32
    scf.if %12 {
      %c0_11 = arith.constant 0 : index
      %c0_12 = arith.constant 0 : index
      %13 = vector.load %arg9[%c0_11, %c0_12] : memref<32x128xf32, #tpu.memory_space<vmem>>, vector<32x128xf32>
      %c0_13 = arith.constant 0 : index
      %c0_14 = arith.constant 0 : index
      %14 = vector.load %arg4[%c0_13, %c0_14] : memref<1x128xf32, #tpu.memory_space<vmem>>, vector<1x128xf32>
      %15 = vector.broadcast %14 : vector<1x128xf32> to vector<32x128xf32>
      %16 = arith.addf %13, %15 : vector<32x128xf32>
      %cst_15 = arith.constant 0.000000e+00 : f32
      %17 = vector.broadcast %cst_15 : f32 to vector<32x128xf32>
      %18 = arith.maximumf %16, %17 : vector<32x128xf32>
      %19 = arith.truncf %18 : vector<32x128xf32> to vector<32x128xbf16>
      %c0_16 = arith.constant 0 : index
      %c0_17 = arith.constant 0 : index
      %20 = vector.load %arg5[%c0_16, %c0_17] : memref<32x32xbf16, #tpu.memory_space<vmem>>, vector<32x32xbf16>
      %cst_18 = arith.constant dense<0.000000e+00> : vector<32x128xf32>
      %21 = tpu.matmul %20, %19, %cst_18 {dimension_numbers = #tpu.dot_dimension_numbers<[1], [0], [0], [1], [0, 0, 1, 1], [], []>} : vector<32x32xbf16>, vector<32x128xbf16>, vector<32x128xf32> -> vector<32x128xf32>
      %cst_19 = arith.constant 2.500000e-01 : f32
      %22 = vector.broadcast %cst_19 : f32 to vector<32x128xf32>
      %23 = arith.mulf %21, %22 : vector<32x128xf32>
      %cst_20 = arith.constant 0.000000e+00 : f32
      %24 = vector.broadcast %cst_20 : f32 to vector<8x128xf32>
      %25 = vector.extract_strided_slice %23 {offsets = [0, 0], sizes = [8, 128], strides = [1, 1]} : vector<32x128xf32> to vector<8x128xf32>
      %26 = arith.truncf %25 : vector<8x128xf32> to vector<8x128xbf16>
      %c0_21 = arith.constant 0 : index
      %c0_22 = arith.constant 0 : index
      %c0_23 = arith.constant 0 : index
      %27 = vector.load %arg6[%c0_21, %c0_22, %c0_23] : memref<4x128x128xbf16, #tpu.memory_space<vmem>>, vector<1x128x128xbf16>
      %28 = vector.shape_cast %27 : vector<1x128x128xbf16> to vector<128x128xbf16>
      %cst_24 = arith.constant dense<0.000000e+00> : vector<8x128xf32>
      %29 = tpu.matmul %26, %28, %cst_24 {dimension_numbers = #tpu.dot_dimension_numbers<[1], [0], [0], [1], [0, 0, 1, 1], [], []>} : vector<8x128xbf16>, vector<128x128xbf16>, vector<8x128xf32> -> vector<8x128xf32>
      %30 = arith.addf %24, %29 : vector<8x128xf32>
      %31 = vector.extract_strided_slice %23 {offsets = [8, 0], sizes = [8, 128], strides = [1, 1]} : vector<32x128xf32> to vector<8x128xf32>
      %32 = arith.truncf %31 : vector<8x128xf32> to vector<8x128xbf16>
      %c1 = arith.constant 1 : index
      %c0_25 = arith.constant 0 : index
      %c0_26 = arith.constant 0 : index
      %33 = vector.load %arg6[%c1, %c0_25, %c0_26] : memref<4x128x128xbf16, #tpu.memory_space<vmem>>, vector<1x128x128xbf16>
      %34 = vector.shape_cast %33 : vector<1x128x128xbf16> to vector<128x128xbf16>
      %cst_27 = arith.constant dense<0.000000e+00> : vector<8x128xf32>
      %35 = tpu.matmul %32, %34, %cst_27 {dimension_numbers = #tpu.dot_dimension_numbers<[1], [0], [0], [1], [0, 0, 1, 1], [], []>} : vector<8x128xbf16>, vector<128x128xbf16>, vector<8x128xf32> -> vector<8x128xf32>
      %36 = arith.addf %30, %35 : vector<8x128xf32>
      %37 = vector.extract_strided_slice %23 {offsets = [16, 0], sizes = [8, 128], strides = [1, 1]} : vector<32x128xf32> to vector<8x128xf32>
      %38 = arith.truncf %37 : vector<8x128xf32> to vector<8x128xbf16>
      %c2 = arith.constant 2 : index
      %c0_28 = arith.constant 0 : index
      %c0_29 = arith.constant 0 : index
      %39 = vector.load %arg6[%c2, %c0_28, %c0_29] : memref<4x128x128xbf16, #tpu.memory_space<vmem>>, vector<1x128x128xbf16>
      %40 = vector.shape_cast %39 : vector<1x128x128xbf16> to vector<128x128xbf16>
      %cst_30 = arith.constant dense<0.000000e+00> : vector<8x128xf32>
      %41 = tpu.matmul %38, %40, %cst_30 {dimension_numbers = #tpu.dot_dimension_numbers<[1], [0], [0], [1], [0, 0, 1, 1], [], []>} : vector<8x128xbf16>, vector<128x128xbf16>, vector<8x128xf32> -> vector<8x128xf32>
      %42 = arith.addf %36, %41 : vector<8x128xf32>
      %43 = vector.extract_strided_slice %23 {offsets = [24, 0], sizes = [8, 128], strides = [1, 1]} : vector<32x128xf32> to vector<8x128xf32>
      %44 = arith.truncf %43 : vector<8x128xf32> to vector<8x128xbf16>
      %c3 = arith.constant 3 : index
      %c0_31 = arith.constant 0 : index
      %c0_32 = arith.constant 0 : index
      %45 = vector.load %arg6[%c3, %c0_31, %c0_32] : memref<4x128x128xbf16, #tpu.memory_space<vmem>>, vector<1x128x128xbf16>
      %46 = vector.shape_cast %45 : vector<1x128x128xbf16> to vector<128x128xbf16>
      %cst_33 = arith.constant dense<0.000000e+00> : vector<8x128xf32>
      %47 = tpu.matmul %44, %46, %cst_33 {dimension_numbers = #tpu.dot_dimension_numbers<[1], [0], [0], [1], [0, 0, 1, 1], [], []>} : vector<8x128xbf16>, vector<128x128xbf16>, vector<8x128xf32> -> vector<8x128xf32>
      %48 = arith.addf %42, %47 : vector<8x128xf32>
      %49 = vector.extract_strided_slice %48 {offsets = [0, 0], sizes = [2, 128], strides = [1, 1]} : vector<8x128xf32> to vector<2x128xf32>
      %c0_34 = arith.constant 0 : index
      %c0_35 = arith.constant 0 : index
      %50 = vector.load %arg7[%c0_34, %c0_35] : memref<1x128xf32, #tpu.memory_space<vmem>>, vector<1x128xf32>
      %51 = vector.broadcast %50 : vector<1x128xf32> to vector<2x128xf32>
      %52 = arith.addf %49, %51 : vector<2x128xf32>
      %c0_36 = arith.constant 0 : index
      %c0_37 = arith.constant 0 : index
      %c0_38 = arith.constant 0 : index
      %53 = vector.load %arg8[%c0_36, %c0_37, %c0_38] : memref<1x2x128xf32, #tpu.memory_space<vmem>>, vector<1x2x128xf32>
      %54 = vector.shape_cast %53 : vector<1x2x128xf32> to vector<2x128xf32>
      %55 = vector.shape_cast %52 : vector<2x128xf32> to vector<1x2x128xf32>
      tpu.vector_store %arg8[%c0_36, %c0_37, %c0_38], %55 {strides = array<i32>} : memref<1x2x128xf32, #tpu.memory_space<vmem>>, vector<1x2x128xf32>,
    } else {
    }
    return
  }
  func.func @transform_0(%arg0: i32, %arg1: i32) -> (i32, i32, i32) {
    %c0_i32 = arith.constant 0 : i32
    %c0_i32_0 = arith.constant 0 : i32
    return %arg0, %c0_i32, %arg1 : i32, i32, i32
  }
  func.func @transform_1(%arg0: i32, %arg1: i32) -> (i32, i32) {
    %c0_i32 = arith.constant 0 : i32
    %c0_i32_0 = arith.constant 0 : i32
    return %arg1, %c0_i32 : i32, i32
  }
  func.func @transform_2(%arg0: i32, %arg1: i32) -> (i32, i32) {
    %c0_i32 = arith.constant 0 : i32
    %c0_i32_0 = arith.constant 0 : i32
    %c0_i32_1 = arith.constant 0 : i32
    return %c0_i32, %c0_i32_0 : i32, i32
  }
  func.func @transform_3(%arg0: i32, %arg1: i32) -> (i32, i32) {
    %c0_i32 = arith.constant 0 : i32
    %c0_i32_0 = arith.constant 0 : i32
    %c0_i32_1 = arith.constant 0 : i32
    return %c0_i32, %c0_i32_0 : i32, i32
  }
  func.func @transform_4(%arg0: i32, %arg1: i32) -> (i32, i32, i32) {
    %c0_i32 = arith.constant 0 : i32
    %c0_i32_0 = arith.constant 0 : i32
    %c0_i32_1 = arith.constant 0 : i32
    %c0_i32_2 = arith.constant 0 : i32
    return %c0_i32, %c0_i32_0, %c0_i32_1 : i32, i32, i32
  }
  func.func @transform_5(%arg0: i32, %arg1: i32) -> (i32, i32) {
    %c0_i32 = arith.constant 0 : i32
    %c0_i32_0 = arith.constant 0 : i32
    %c0_i32_1 = arith.constant 0 : i32
    return %c0_i32, %c0_i32_0 : i32, i32
  }
  func.func @transform_6(%arg0: i32, %arg1: i32) -> (i32, i32, i32) {
    %c0_i32 = arith.constant 0 : i32
    %c0_i32_0 = arith.constant 0 : i32
    %c0_i32_1 = arith.constant 0 : i32
    return %arg0, %c0_i32, %c0_i32_0 : i32, i32, i32
  }
}

</mosaic_0001>

<llo_original>
// kernel: tpu_custom_call.1
$region0: #{tpu_custom_call.1}
  #allocation0 [shape = 'u32[]', space=smem, size = 0x4, offset = 0x4, fixed_abs, tag = 'smem constant byte address 0x4 - core index']
  #allocation1 [shape = 'u32[144,128]{1,0:T(1,128)}', space=vmem, size = 0x12000, scoped, tag = 'internal scratch']
  #allocation2 [shape = 'f32[32,128]{1,0:T(8,128)}', space=vmem, size = 0x4000, scoped, tag = 'scratch operand']
  %s0 = inlined_call_operand.hbm [shape: bf16[1,32,128], index: 0, kind: input, shape index: {}]
  %s1 = inlined_call_operand.hbm [shape: bf16[128,128], index: 1, kind: input, shape index: {}]
  %s2 = inlined_call_operand.vmem [shape: f32[1,128], index: 2, kind: input, shape index: {}]
  %s3 = inlined_call_operand.hbm [shape: bf16[32,32], index: 3, kind: input, shape index: {}]
  %s4 = inlined_call_operand.hbm [shape: bf16[4,128,128], index: 4, kind: input, shape index: {}]
  %s5 = inlined_call_operand.vmem [shape: f32[1,128], index: 5, kind: input, shape index: {}]
  %s6 = inlined_call_operand.hbm [shape: f32[1,2,128], index: 6, kind: output, shape index: {}]
  %s7 = sld [smem:[#allocation0]]
  $region58: #{tpu_custom_call.1} parent=0
    _
  %s9 = ssub.s32 1, %s7
  %s10 = scalar_select 0, %s9, %s7
  $region1: #{tpu_custom_call.1} parent=0
    #allocation3 [shape = 'u8[8192]{0}', space=vmem, size = 0x2000, scoped, tag = 'input window, operand 0, single buffered']
    #allocation4 [shape = 's32[1]{0}', space=sflag, size = 0x4, scoped, tag = 'scoped memory for tpu_custom_call.1']
    #allocation5 [shape = 's32[1]{0}', space=sflag, size = 0x4, scoped, tag = 'scoped memory for tpu_custom_call.1']
    #allocation6 [shape = 'u8[32768]{0}', space=vmem, size = 0x8000, scoped, tag = 'input window, operand 1, single buffered']
    #allocation7 [shape = 's32[1]{0}', space=sflag, size = 0x4, scoped, tag = 'scoped memory for tpu_custom_call.1']
    #allocation8 [shape = 'u8[8192]{0}', space=vmem, size = 0x2000, scoped, tag = 'input window, operand 3, single buffered']
    #allocation9 [shape = 'u8[131072]{0}', space=vmem, size = 0x20000, scoped, tag = 'input window, operand 4, single buffered']
    #allocation10 [shape = 's32[1]{0}', space=sflag, size = 0x4, scoped, tag = 'scoped memory for tpu_custom_call.1']
    #allocation11 [shape = 'u8[1024]{0}', space=vmem, size = 0x400, scoped, tag = 'output window, operand 0, single buffered']
    %11 = vsyncpa [#allocation4], 0
    %12 = vsyncpa [#allocation7], 0
    %13 = vsyncpa [#allocation10], 0
    %14 = vsyncpa [#allocation5], 0
    // Predicated region
    $region2: #{tpu_custom_call.1} parent=1 // pred_check
      _
    $region3: #{tpu_custom_call.1} parent=1 // pred_check_branch
      %16 = sbr.rel (0) target = $region5
    $region4: #{tpu_custom_call.1} parent=1 // pred_region
      %s18 = ssub.s32 256, 256
      %19 = vsyncadd [#allocation4], %s18
      %s20 = sshll.u32 [#allocation3], 4
      %s21 = int_to_ptr.vmem [resolvable:$true] %s20
      %26 = dma.hbm_to_vmem [thread:$0]  %s0, 256, %s21, [#allocation4], 64, 64, 4
    $region5: #{tpu_custom_call.1} parent=1 // pred_fallthru
      _
    // Predicated region
    $region6: #{tpu_custom_call.1} parent=1 // pred_check
      _
    $region7: #{tpu_custom_call.1} parent=1 // pred_check_branch
      %28 = sbr.rel (0) target = $region9
    $region8: #{tpu_custom_call.1} parent=1 // pred_region
      %s30 = ssub.s32 1024, 1024
      %31 = vsyncadd [#allocation7], %s30
      %s32 = sshll.u32 [#allocation6], 4
      %s33 = int_to_ptr.vmem [resolvable:$true] %s32
      %38 = dma.hbm_to_vmem [thread:$0]  %s1, 1024, %s33, [#allocation7], 64, 64, 4
    $region9: #{tpu_custom_call.1} parent=1 // pred_fallthru
      _
    // Predicated region
    $region10: #{tpu_custom_call.1} parent=1 // pred_check
      _
    $region11: #{tpu_custom_call.1} parent=1 // pred_check_branch
      %40 = sbr.rel (0) target = $region13
    $region12: #{tpu_custom_call.1} parent=1 // pred_region
      _
    $region13: #{tpu_custom_call.1} parent=1 // pred_fallthru
      _
    // Predicated region
    $region14: #{tpu_custom_call.1} parent=1 // pred_check
      _
    $region15: #{tpu_custom_call.1} parent=1 // pred_check_branch
      %42 = sbr.rel (0) target = $region17
    $region16: #{tpu_custom_call.1} parent=1 // pred_region
      %s44 = ssub.s32 256, 256
      %45 = vsyncadd [#allocation7], %s44
      %s46 = sshll.u32 [#allocation8], 4
      %s47 = int_to_ptr.vmem [resolvable:$true] %s46
      %52 = dma.hbm_to_vmem [thread:$0]  %s3, 256, %s47, [#allocation7], 64, 64, 4
    $region17: #{tpu_custom_call.1} parent=1 // pred_fallthru
      _
    // Predicated region
    $region18: #{tpu_custom_call.1} parent=1 // pred_check
      _
    $region19: #{tpu_custom_call.1} parent=1 // pred_check_branch
      %54 = sbr.rel (0) target = $region21
    $region20: #{tpu_custom_call.1} parent=1 // pred_region
      %s56 = ssub.s32 4096, 4096
      %57 = vsyncadd [#allocation10], %s56
      %s58 = sshll.u32 [#allocation9], 4
      %s59 = int_to_ptr.vmem [resolvable:$true] %s58
      %64 = dma.hbm_to_vmem [thread:$0]  %s4, 4096, %s59, [#allocation10], 64, 64, 4
    $region21: #{tpu_custom_call.1} parent=1 // pred_fallthru
      _
    // Predicated region
    $region22: #{tpu_custom_call.1} parent=1 // pred_check
      _
    $region23: #{tpu_custom_call.1} parent=1 // pred_check_branch
      %66 = sbr.rel (0) target = $region25
    $region24: #{tpu_custom_call.1} parent=1 // pred_region
      _
    $region25: #{tpu_custom_call.1} parent=1 // pred_fallthru
      _
    // Predicated region
    $region26: #{tpu_custom_call.1} parent=1 // pred_check
      _
    $region27: #{tpu_custom_call.1} parent=1 // pred_check_branch
      %68 = sbr.rel (0) target = $region29
    $region28: #{tpu_custom_call.1} parent=1 // pred_region
      %69 = dma.done [#allocation4], 256
    $region29: #{tpu_custom_call.1} parent=1 // pred_fallthru
      _
    // Predicated region
    $region30: #{tpu_custom_call.1} parent=1 // pred_check
      _
    $region31: #{tpu_custom_call.1} parent=1 // pred_check_branch
      %71 = sbr.rel (0) target = $region33
    $region32: #{tpu_custom_call.1} parent=1 // pred_region
      %72 = dma.done [#allocation7], 1024
    $region33: #{tpu_custom_call.1} parent=1 // pred_fallthru
      _
    // Predicated region
    $region34: #{tpu_custom_call.1} parent=1 // pred_check
      _
    $region35: #{tpu_custom_call.1} parent=1 // pred_check_branch
      %74 = sbr.rel (0) target = $region37
    $region36: #{tpu_custom_call.1} parent=1 // pred_region
      %75 = dma.done [#allocation7], 256
    $region37: #{tpu_custom_call.1} parent=1 // pred_fallthru
      _
    // Predicated region
    $region38: #{tpu_custom_call.1} parent=1 // pred_check
      _
    $region39: #{tpu_custom_call.1} parent=1 // pred_check_branch
      %77 = sbr.rel (0) target = $region41
    $region40: #{tpu_custom_call.1} parent=1 // pred_region
      %78 = dma.done [#allocation10], 4096
    $region41: #{tpu_custom_call.1} parent=1 // pred_fallthru
      _
    %p80 = scmp.eq.s32.totalorder 0, 0
    // Predicated region
    $region42: #{tpu_custom_call.1} parent=1 // pred_check
      %p81 = pneg %p80
    $region43: #{tpu_custom_call.1} parent=1 // pred_check_branch
      %83 = sbr.rel (%p81) target = $region45
    $region44: #{tpu_custom_call.1} parent=1 // pred_region
      %84 = vst [vmem:[#allocation2] sm:$0xff] 0.0
      %85 = vst [vmem:[#allocation2 + $0x8] sm:$0xff] 0.0
      %86 = vst [vmem:[#allocation2 + $0x10] sm:$0xff] 0.0
      %87 = vst [vmem:[#allocation2 + $0x18] sm:$0xff] 0.0
    $region45: #{tpu_custom_call.1} parent=1 // pred_fallthru
      _
    %v88 = vld [vmem:[#allocation2] sm:$0xff]
    %v89 = vld [vmem:[#allocation2 + $0x8] sm:$0xff]
    %v90 = vld [vmem:[#allocation2 + $0x10] sm:$0xff]
    %v91 = vld [vmem:[#allocation2 + $0x18] sm:$0xff]
    %v92 = vld [vmem:[#allocation3] sm:$0xf]
    %v93 = vld [vmem:[#allocation3 + $0x4] sm:$0xf]
    %v94 = vld [vmem:[#allocation3 + $0x8] sm:$0xf]
    %v95 = vld [vmem:[#allocation3 + $0xc] sm:$0xf]
    %v96 = vld [vmem:[#allocation6] sm:$0xf]
    %v97 = vld [vmem:[#allocation6 + $0x4] sm:$0xf]
    %v98 = vld [vmem:[#allocation6 + $0x8] sm:$0xf]
    %v99 = vld [vmem:[#allocation6 + $0xc] sm:$0xf]
    %v100 = vld [vmem:[#allocation6 + $0x10] sm:$0xf]
    %v101 = vld [vmem:[#allocation6 + $0x14] sm:$0xf]
    %v102 = vld [vmem:[#allocation6 + $0x18] sm:$0xf]
    %v103 = vld [vmem:[#allocation6 + $0x1c] sm:$0xf]
    %v104 = vld [vmem:[#allocation6 + $0x20] sm:$0xf]
    %v105 = vld [vmem:[#allocation6 + $0x24] sm:$0xf]
    %v106 = vld [vmem:[#allocation6 + $0x28] sm:$0xf]
    %v107 = vld [vmem:[#allocation6 + $0x2c] sm:$0xf]
    %v108 = vld [vmem:[#allocation6 + $0x30] sm:$0xf]
    %v109 = vld [vmem:[#allocation6 + $0x34] sm:$0xf]
    %v110 = vld [vmem:[#allocation6 + $0x38] sm:$0xf]
    %v111 = vld [vmem:[#allocation6 + $0x3c] sm:$0xf]
    %v116 = vunpack.c.l.b16 %v92
    %v117 = vunpack.c.l.b16 %v93
    %v118 = vunpack.c.l.b16 %v94
    %v119 = vunpack.c.l.b16 %v95
    %v120 = vpack.c.b16 %v117, %v116
    %v121 = vpack.c.b16 %v119, %v118
    %v140 = vunpack.c.l.b16 %v96
    %v141 = vunpack.c.l.b16 %v97
    %v142 = vunpack.c.l.b16 %v98
    %v143 = vunpack.c.l.b16 %v99
    %v144 = vunpack.c.l.b16 %v100
    %v145 = vunpack.c.l.b16 %v101
    %v146 = vunpack.c.l.b16 %v102
    %v147 = vunpack.c.l.b16 %v103
    %v148 = vunpack.c.l.b16 %v104
    %v149 = vunpack.c.l.b16 %v105
    %v150 = vunpack.c.l.b16 %v106
    %v151 = vunpack.c.l.b16 %v107
    %v152 = vunpack.c.l.b16 %v108
    %v153 = vunpack.c.l.b16 %v109
    %v154 = vunpack.c.l.b16 %v110
    %v155 = vunpack.c.l.b16 %v111
    %v156 = vpack.c.b16 %v141, %v140
    %v157 = vpack.c.b16 %v143, %v142
    %v158 = vpack.c.b16 %v145, %v144
    %v159 = vpack.c.b16 %v147, %v146
    %v160 = vpack.c.b16 %v149, %v148
    %v161 = vpack.c.b16 %v151, %v150
    %v162 = vpack.c.b16 %v153, %v152
    %v163 = vpack.c.b16 %v155, %v154
    %172 = vmatprep.subr.bf16.mxu0 0
    %173 = vmatpush1.bf16.msra.mxu0 %v156
    %174 = vmatprep.subr.bf16.mxu0 0
    %175 = vmatpush1.bf16.msra.mxu0 %v157
    %176 = vmatprep.subr.bf16.mxu0 0
    %177 = vmatpush1.bf16.msra.mxu0 %v158
    %178 = vmatprep.subr.bf16.mxu0 0
    %179 = vmatpush1.bf16.msra.mxu0 %v159
    %180 = vmatprep.subr.bf16.mxu0 0
    %181 = vmatpush1.bf16.msra.mxu0 %v160
    %182 = vmatprep.subr.bf16.mxu0 0
    %183 = vmatpush1.bf16.msra.mxu0 %v161
    %184 = vmatprep.subr.bf16.mxu0 0
    %185 = vmatpush1.bf16.msra.mxu0 %v162
    %186 = vmatprep.subr.bf16.mxu0 0
    %187 = vmatpush1.bf16.msra.mxu0 %v163
    %188 = vmatprep.subr.bf16.mxu0 0
    %189 = vmatpush1.bf16.msra.mxu0 0
    %190 = vmatprep.subr.bf16.mxu0 0
    %191 = vmatpush1.bf16.msra.mxu0 0
    %192 = vmatprep.subr.bf16.mxu0 0
    %193 = vmatpush1.bf16.msra.mxu0 0
    %194 = vmatprep.subr.bf16.mxu0 0
    %195 = vmatpush1.bf16.msra.mxu0 0
    %196 = vmatprep.subr.bf16.mxu0 0
    %197 = vmatpush1.bf16.msra.mxu0 0
    %198 = vmatprep.subr.bf16.mxu0 0
    %199 = vmatpush1.bf16.msra.mxu0 0
    %200 = vmatprep.subr.bf16.mxu0 0
    %201 = vmatpush1.bf16.msra.mxu0 0
    %202 = vmatprep.subr.bf16.mxu0 0
    %203 = vmatpush1.bf16.msra.mxu0 0
    %204 = vmatprep.mubr.bf16.mxu0 0
    %205 = vmatmul.mubr.bf16.gmra.mrb[0].mxu0 %v120
    %v206 = vpop.f32.mrb[0].mxu0
    %v207 = vadd.f32 0.0, %v206
    %v208 = vpop.f32.mrb[0].mxu0
    %v209 = vpop.f32.mrb[0].mxu0
    %v210 = vadd.f32 0.0, %v209
    %v211 = vpop.f32.mrb[0].mxu0
    %212 = vmatprep.mubr.bf16.mxu0 0
    %213 = vmatmul.mubr.bf16.gmra.mrb[0].mxu0 %v121
    %v214 = vpop.f32.mrb[0].mxu0
    %v215 = vadd.f32 0.0, %v214
    %v216 = vpop.f32.mrb[0].mxu0
    %v217 = vpop.f32.mrb[0].mxu0
    %v218 = vadd.f32 0.0, %v217
    %v219 = vpop.f32.mrb[0].mxu0
    %220 = vdwg.mxu0
    %v221 = vadd.f32 %v88, %v207
    %v222 = vadd.f32 %v89, %v210
    %v223 = vadd.f32 %v90, %v215
    %v224 = vadd.f32 %v91, %v218
    %225 = vst [vmem:[#allocation2] sm:$0xff] %v221
    %226 = vst [vmem:[#allocation2 + $0x8] sm:$0xff] %v222
    %227 = vst [vmem:[#allocation2 + $0x10] sm:$0xff] %v223
    %228 = vst [vmem:[#allocation2 + $0x18] sm:$0xff] %v224
    // Predicated region
    $region46: #{tpu_custom_call.1} parent=1 // pred_check
      %p229 = pneg %p80
    $region47: #{tpu_custom_call.1} parent=1 // pred_check_branch
      %231 = sbr.rel (%p229) target = $region49
    $region48: #{tpu_custom_call.1} parent=1 // pred_region
      %v232 = vld [vmem:[#allocation2] sm:$0xff]
      %v233 = vld [vmem:[#allocation2 + $0x8] sm:$0xff]
      %v234 = vld [vmem:[#allocation2 + $0x10] sm:$0xff]
      %v235 = vld [vmem:[#allocation2 + $0x18] sm:$0xff]
      %v236 = vld [vmem:[%s2] sm:$0x1]
      %v238 = vlaneseq
      %v239 = vshrl.u32 %v238, 7
      %v240 = vsub.s32 0, %v239
      %v241 = vrot.slane %v236, %v240
      %v243 = vadd.f32 %v232, %v241
      %v244 = vadd.f32 %v233, %v241
      %v245 = vadd.f32 %v234, %v241
      %v246 = vadd.f32 %v235, %v241
      %v247 = vmax.f32 %v243, 0.0
      %v248 = vmax.f32 %v244, 0.0
      %v249 = vmax.f32 %v245, 0.0
      %v250 = vmax.f32 %v246, 0.0
      %v251 = vpack.c.bf16 %v248, %v247
      %v252 = vpack.c.bf16 %v250, %v249
      %v253 = vld [vmem:[#allocation8] sm:$0xf]
      %v254 = vld [vmem:[#allocation8 + $0x4] sm:$0xf]
      %v255 = vld [vmem:[#allocation8 + $0x8] sm:$0xf]
      %v256 = vld [vmem:[#allocation8 + $0xc] sm:$0xf]
      %v261 = vunpack.c.l.b16 %v253
      %v262 = vunpack.c.l.b16 %v254
      %v263 = vunpack.c.l.b16 %v255
      %v264 = vunpack.c.l.b16 %v256
      %v265 = vpack.c.b16 %v262, %v261
      %v266 = vpack.c.b16 %v264, %v263
      %vm267 = vcmask 261120
      %v269 = vsel %vm267, %v265, 0
      %v272 = vsel %vm267, %v266, 0
      %274 = vmatprep.subr.bf16.mxu0 0
      %275 = vmatpush1.bf16.msra.mxu0 %v251
      %276 = vmatprep.subr.bf16.mxu0 0
      %277 = vmatpush1.bf16.msra.mxu0 %v252
      %278 = vmatprep.subr.bf16.mxu0 0
      %279 = vmatpush1.bf16.msra.mxu0 0
      %280 = vmatprep.subr.bf16.mxu0 0
      %281 = vmatpush1.bf16.msra.mxu0 0
      %282 = vmatprep.subr.bf16.mxu0 0
      %283 = vmatpush1.bf16.msra.mxu0 0
      %284 = vmatprep.subr.bf16.mxu0 0
      %285 = vmatpush1.bf16.msra.mxu0 0
      %286 = vmatprep.subr.bf16.mxu0 0
      %287 = vmatpush1.bf16.msra.mxu0 0
      %288 = vmatprep.subr.bf16.mxu0 0
      %289 = vmatpush1.bf16.msra.mxu0 0
      %290 = vmatprep.subr.bf16.mxu0 0
      %291 = vmatpush1.bf16.msra.mxu0 0
      %292 = vmatprep.subr.bf16.mxu0 0
      %293 = vmatpush1.bf16.msra.mxu0 0
      %294 = vmatprep.subr.bf16.mxu0 0
      %295 = vmatpush1.bf16.msra.mxu0 0
      %296 = vmatprep.subr.bf16.mxu0 0
      %297 = vmatpush1.bf16.msra.mxu0 0
      %298 = vmatprep.subr.bf16.mxu0 0
      %299 = vmatpush1.bf16.msra.mxu0 0
      %300 = vmatprep.subr.bf16.mxu0 0
      %301 = vmatpush1.bf16.msra.mxu0 0
      %302 = vmatprep.subr.bf16.mxu0 0
      %303 = vmatpush1.bf16.msra.mxu0 0
      %304 = vmatprep.subr.bf16.mxu0 0
      %305 = vmatpush1.bf16.msra.mxu0 0
      %306 = vmatprep.mubr.bf16.mxu0 0
      %307 = vmatmul.mubr.bf16.gmra.mrb[0].mxu0 %v269
      %v308 = vpop.f32.mrb[0].mxu0
      %v309 = vadd.f32 0.0, %v308
      %v310 = vpop.f32.mrb[0].mxu0
      %v311 = vpop.f32.mrb[0].mxu0
      %v312 = vadd.f32 0.0, %v311
      %v313 = vpop.f32.mrb[0].mxu0
      %314 = vmatprep.mubr.bf16.mxu0 0
      %315 = vmatmul.mubr.bf16.gmra.mrb[0].mxu0 %v272
      %v316 = vpop.f32.mrb[0].mxu0
      %v317 = vadd.f32 0.0, %v316
      %v318 = vpop.f32.mrb[0].mxu0
      %v319 = vpop.f32.mrb[0].mxu0
      %v320 = vadd.f32 0.0, %v319
      %v321 = vpop.f32.mrb[0].mxu0
      %322 = vdwg.mxu0
      %v323 = vmul.f32 %v309, 0.25
      %v324 = vmul.f32 %v312, 0.25
      %v325 = vmul.f32 %v317, 0.25
      %v326 = vmul.f32 %v320, 0.25
      %v327 = vpack.c.bf16 %v323, %v323
      %v328 = vld [vmem:[#allocation9] sm:$0xf]
      %v329 = vld [vmem:[#allocation9 + $0x4] sm:$0xf]
      %v330 = vld [vmem:[#allocation9 + $0x8] sm:$0xf]
      %v331 = vld [vmem:[#allocation9 + $0xc] sm:$0xf]
      %v332 = vld [vmem:[#allocation9 + $0x10] sm:$0xf]
      %v333 = vld [vmem:[#allocation9 + $0x14] sm:$0xf]
      %v334 = vld [vmem:[#allocation9 + $0x18] sm:$0xf]
      %v335 = vld [vmem:[#allocation9 + $0x1c] sm:$0xf]
      %v336 = vld [vmem:[#allocation9 + $0x20] sm:$0xf]
      %v337 = vld [vmem:[#allocation9 + $0x24] sm:$0xf]
      %v338 = vld [vmem:[#allocation9 + $0x28] sm:$0xf]
      %v339 = vld [vmem:[#allocation9 + $0x2c] sm:$0xf]
      %v340 = vld [vmem:[#allocation9 + $0x30] sm:$0xf]
      %v341 = vld [vmem:[#allocation9 + $0x34] sm:$0xf]
      %v342 = vld [vmem:[#allocation9 + $0x38] sm:$0xf]
      %v343 = vld [vmem:[#allocation9 + $0x3c] sm:$0xf]
      %v344 = vpack.c.bf16 %v324, %v324
      %s345 = scalar_lea.vmem [#allocation9], 64
      %v346 = vld [vmem:[%s345] sm:$0xf]
      %v347 = vld [vmem:[%s345 + $0x4] sm:$0xf]
      %v348 = vld [vmem:[%s345 + $0x8] sm:$0xf]
      %v349 = vld [vmem:[%s345 + $0xc] sm:$0xf]
      %v350 = vld [vmem:[%s345 + $0x10] sm:$0xf]
      %v351 = vld [vmem:[%s345 + $0x14] sm:$0xf]
      %v352 = vld [vmem:[%s345 + $0x18] sm:$0xf]
      %v353 = vld [vmem:[%s345 + $0x1c] sm:$0xf]
      %v354 = vld [vmem:[%s345 + $0x20] sm:$0xf]
      %v355 = vld [vmem:[%s345 + $0x24] sm:$0xf]
      %v356 = vld [vmem:[%s345 + $0x28] sm:$0xf]
      %v357 = vld [vmem:[%s345 + $0x2c] sm:$0xf]
      %v358 = vld [vmem:[%s345 + $0x30] sm:$0xf]
      %v359 = vld [vmem:[%s345 + $0x34] sm:$0xf]
      %v360 = vld [vmem:[%s345 + $0x38] sm:$0xf]
      %v361 = vld [vmem:[%s345 + $0x3c] sm:$0xf]
      %v378 = vunpack.c.l.b16 %v346
      %v379 = vunpack.c.l.b16 %v347
      %v380 = vunpack.c.l.b16 %v348
      %v381 = vunpack.c.l.b16 %v349
      %v382 = vunpack.c.l.b16 %v350
      %v383 = vunpack.c.l.b16 %v351
      %v384 = vunpack.c.l.b16 %v352
      %v385 = vunpack.c.l.b16 %v353
      %v386 = vunpack.c.l.b16 %v354
      %v387 = vunpack.c.l.b16 %v355
      %v388 = vunpack.c.l.b16 %v356
      %v389 = vunpack.c.l.b16 %v357
      %v390 = vunpack.c.l.b16 %v358
      %v391 = vunpack.c.l.b16 %v359
      %v392 = vunpack.c.l.b16 %v360
      %v393 = vunpack.c.l.b16 %v361
      %v394 = vpack.c.b16 %v379, %v378
      %v395 = vpack.c.b16 %v381, %v380
      %v396 = vpack.c.b16 %v383, %v382
      %v397 = vpack.c.b16 %v385, %v384
      %v398 = vpack.c.b16 %v387, %v386
      %v399 = vpack.c.b16 %v389, %v388
      %v400 = vpack.c.b16 %v391, %v390
      %v401 = vpack.c.b16 %v393, %v392
      %410 = vmatprep.subr.bf16.mxu0 0
      %411 = vmatpush1.bf16.msra.mxu0 %v394
      %412 = vmatprep.subr.bf16.mxu0 0
      %413 = vmatpush1.bf16.msra.mxu0 %v395
      %414 = vmatprep.subr.bf16.mxu0 0
      %415 = vmatpush1.bf16.msra.mxu0 %v396
      %416 = vmatprep.subr.bf16.mxu0 0
      %417 = vmatpush1.bf16.msra.mxu0 %v397
      %418 = vmatprep.subr.bf16.mxu0 0
      %419 = vmatpush1.bf16.msra.mxu0 %v398
      %420 = vmatprep.subr.bf16.mxu0 0
      %421 = vmatpush1.bf16.msra.mxu0 %v399
      %422 = vmatprep.subr.bf16.mxu0 0
      %423 = vmatpush1.bf16.msra.mxu0 %v400
      %424 = vmatprep.subr.bf16.mxu0 0
      %425 = vmatpush1.bf16.msra.mxu0 %v401
      %426 = vmatprep.subr.bf16.mxu0 0
      %427 = vmatpush1.bf16.msra.mxu0 0
      %428 = vmatprep.subr.bf16.mxu0 0
      %429 = vmatpush1.bf16.msra.mxu0 0
      %430 = vmatprep.subr.bf16.mxu0 0
      %431 = vmatpush1.bf16.msra.mxu0 0
      %432 = vmatprep.subr.bf16.mxu0 0
      %433 = vmatpush1.bf16.msra.mxu0 0
      %434 = vmatprep.subr.bf16.mxu0 0
      %435 = vmatpush1.bf16.msra.mxu0 0
      %436 = vmatprep.subr.bf16.mxu0 0
      %437 = vmatpush1.bf16.msra.mxu0 0
      %438 = vmatprep.subr.bf16.mxu0 0
      %439 = vmatpush1.bf16.msra.mxu0 0
      %440 = vmatprep.subr.bf16.mxu0 0
      %441 = vmatpush1.bf16.msra.mxu0 0
      %442 = vmatprep.mubr.bf16.mxu0 0
      %443 = vmatmul.mubr.bf16.gmra.mrb[0].mxu0 %v344
      %v444 = vpop.f32.mrb[0].mxu0
      %v445 = vadd.f32 0.0, %v444
      %v446 = vpop.f32.mrb[0].mxu0
      %v447 = vpop.f32.mrb[0].mxu0
      %v448 = vpop.f32.mrb[0].mxu0
      %449 = vdwg.mxu0
      %v466 = vunpack.c.l.b16 %v328
      %v467 = vunpack.c.l.b16 %v329
      %v468 = vunpack.c.l.b16 %v330
      %v469 = vunpack.c.l.b16 %v331
      %v470 = vunpack.c.l.b16 %v332
      %v471 = vunpack.c.l.b16 %v333
      %v472 = vunpack.c.l.b16 %v334
      %v473 = vunpack.c.l.b16 %v335
      %v474 = vunpack.c.l.b16 %v336
      %v475 = vunpack.c.l.b16 %v337
      %v476 = vunpack.c.l.b16 %v338
      %v477 = vunpack.c.l.b16 %v339
      %v478 = vunpack.c.l.b16 %v340
      %v479 = vunpack.c.l.b16 %v341
      %v480 = vunpack.c.l.b16 %v342
      %v481 = vunpack.c.l.b16 %v343
      %v482 = vpack.c.b16 %v467, %v466
      %v483 = vpack.c.b16 %v469, %v468
      %v484 = vpack.c.b16 %v471, %v470
      %v485 = vpack.c.b16 %v473, %v472
      %v486 = vpack.c.b16 %v475, %v474
      %v487 = vpack.c.b16 %v477, %v476
      %v488 = vpack.c.b16 %v479, %v478
      %v489 = vpack.c.b16 %v481, %v480
      %498 = vmatprep.subr.bf16.mxu0 0
      %499 = vmatpush1.bf16.msra.mxu0 %v482
      %500 = vmatprep.subr.bf16.mxu0 0
      %501 = vmatpush1.bf16.msra.mxu0 %v483
      %502 = vmatprep.subr.bf16.mxu0 0
      %503 = vmatpush1.bf16.msra.mxu0 %v484
      %504 = vmatprep.subr.bf16.mxu0 0
      %505 = vmatpush1.bf16.msra.mxu0 %v485
      %506 = vmatprep.subr.bf16.mxu0 0
      %507 = vmatpush1.bf16.msra.mxu0 %v486
      %508 = vmatprep.subr.bf16.mxu0 0
      %509 = vmatpush1.bf16.msra.mxu0 %v487
      %510 = vmatprep.subr.bf16.mxu0 0
      %511 = vmatpush1.bf16.msra.mxu0 %v488
      %512 = vmatprep.subr.bf16.mxu0 0
      %513 = vmatpush1.bf16.msra.mxu0 %v489
      %514 = vmatprep.subr.bf16.mxu0 0
      %515 = vmatpush1.bf16.msra.mxu0 0
      %516 = vmatprep.subr.bf16.mxu0 0
      %517 = vmatpush1.bf16.msra.mxu0 0
      %518 = vmatprep.subr.bf16.mxu0 0
      %519 = vmatpush1.bf16.msra.mxu0 0
      %520 = vmatprep.subr.bf16.mxu0 0
      %521 = vmatpush1.bf16.msra.mxu0 0
      %522 = vmatprep.subr.bf16.mxu0 0
      %523 = vmatpush1.bf16.msra.mxu0 0
      %524 = vmatprep.subr.bf16.mxu0 0
      %525 = vmatpush1.bf16.msra.mxu0 0
      %526 = vmatprep.subr.bf16.mxu0 0
      %527 = vmatpush1.bf16.msra.mxu0 0
      %528 = vmatprep.subr.bf16.mxu0 0
      %529 = vmatpush1.bf16.msra.mxu0 0
      %530 = vmatprep.mubr.bf16.mxu0 0
      %531 = vmatmul.mubr.bf16.gmra.mrb[0].mxu0 %v327
      %v532 = vpop.f32.mrb[0].mxu0
      %v533 = vadd.f32 %v445, %v532
      %v534 = vpop.f32.mrb[0].mxu0
      %v535 = vpop.f32.mrb[0].mxu0
      %v536 = vpop.f32.mrb[0].mxu0
      %537 = vdwg.mxu0
      %v538 = vpack.c.bf16 %v325, %v325
      %s539 = scalar_lea.vmem [#allocation9], 128
      %v540 = vld [vmem:[%s539] sm:$0xf]
      %v541 = vld [vmem:[%s539 + $0x4] sm:$0xf]
      %v542 = vld [vmem:[%s539 + $0x8] sm:$0xf]
      %v543 = vld [vmem:[%s539 + $0xc] sm:$0xf]
      %v544 = vld [vmem:[%s539 + $0x10] sm:$0xf]
      %v545 = vld [vmem:[%s539 + $0x14] sm:$0xf]
      %v546 = vld [vmem:[%s539 + $0x18] sm:$0xf]
      %v547 = vld [vmem:[%s539 + $0x1c] sm:$0xf]
      %v548 = vld [vmem:[%s539 + $0x20] sm:$0xf]
      %v549 = vld [vmem:[%s539 + $0x24] sm:$0xf]
      %v550 = vld [vmem:[%s539 + $0x28] sm:$0xf]
      %v551 = vld [vmem:[%s539 + $0x2c] sm:$0xf]
      %v552 = vld [vmem:[%s539 + $0x30] sm:$0xf]
      %v553 = vld [vmem:[%s539 + $0x34] sm:$0xf]
      %v554 = vld [vmem:[%s539 + $0x38] sm:$0xf]
      %v555 = vld [vmem:[%s539 + $0x3c] sm:$0xf]
      %v572 = vunpack.c.l.b16 %v540
      %v573 = vunpack.c.l.b16 %v541
      %v574 = vunpack.c.l.b16 %v542
      %v575 = vunpack.c.l.b16 %v543
      %v576 = vunpack.c.l.b16 %v544
      %v577 = vunpack.c.l.b16 %v545
      %v578 = vunpack.c.l.b16 %v546
      %v579 = vunpack.c.l.b16 %v547
      %v580 = vunpack.c.l.b16 %v548
      %v581 = vunpack.c.l.b16 %v549
      %v582 = vunpack.c.l.b16 %v550
      %v583 = vunpack.c.l.b16 %v551
      %v584 = vunpack.c.l.b16 %v552
      %v585 = vunpack.c.l.b16 %v553
      %v586 = vunpack.c.l.b16 %v554
      %v587 = vunpack.c.l.b16 %v555
      %v588 = vpack.c.b16 %v573, %v572
      %v589 = vpack.c.b16 %v575, %v574
      %v590 = vpack.c.b16 %v577, %v576
      %v591 = vpack.c.b16 %v579, %v578
      %v592 = vpack.c.b16 %v581, %v580
      %v593 = vpack.c.b16 %v583, %v582
      %v594 = vpack.c.b16 %v585, %v584
      %v595 = vpack.c.b16 %v587, %v586
      %604 = vmatprep.subr.bf16.mxu0 0
      %605 = vmatpush1.bf16.msra.mxu0 %v588
      %606 = vmatprep.subr.bf16.mxu0 0
      %607 = vmatpush1.bf16.msra.mxu0 %v589
      %608 = vmatprep.subr.bf16.mxu0 0
      %609 = vmatpush1.bf16.msra.mxu0 %v590
      %610 = vmatprep.subr.bf16.mxu0 0
      %611 = vmatpush1.bf16.msra.mxu0 %v591
      %612 = vmatprep.subr.bf16.mxu0 0
      %613 = vmatpush1.bf16.msra.mxu0 %v592
      %614 = vmatprep.subr.bf16.mxu0 0
      %615 = vmatpush1.bf16.msra.mxu0 %v593
      %616 = vmatprep.subr.bf16.mxu0 0
      %617 = vmatpush1.bf16.msra.mxu0 %v594
      %618 = vmatprep.subr.bf16.mxu0 0
      %619 = vmatpush1.bf16.msra.mxu0 %v595
      %620 = vmatprep.subr.bf16.mxu0 0
      %621 = vmatpush1.bf16.msra.mxu0 0
      %622 = vmatprep.subr.bf16.mxu0 0
      %623 = vmatpush1.bf16.msra.mxu0 0
      %624 = vmatprep.subr.bf16.mxu0 0
      %625 = vmatpush1.bf16.msra.mxu0 0
      %626 = vmatprep.subr.bf16.mxu0 0
      %627 = vmatpush1.bf16.msra.mxu0 0
      %628 = vmatprep.subr.bf16.mxu0 0
      %629 = vmatpush1.bf16.msra.mxu0 0
      %630 = vmatprep.subr.bf16.mxu0 0
      %631 = vmatpush1.bf16.msra.mxu0 0
      %632 = vmatprep.subr.bf16.mxu0 0
      %633 = vmatpush1.bf16.msra.mxu0 0
      %634 = vmatprep.subr.bf16.mxu0 0
      %635 = vmatpush1.bf16.msra.mxu0 0
      %636 = vmatprep.mubr.bf16.mxu0 0
      %637 = vmatmul.mubr.bf16.gmra.mrb[0].mxu0 %v538
      %v638 = vpop.f32.mrb[0].mxu0
      %v639 = vadd.f32 0.0, %v638
      %v640 = vpop.f32.mrb[0].mxu0
      %v641 = vpop.f32.mrb[0].mxu0
      %v642 = vpop.f32.mrb[0].mxu0
      %643 = vdwg.mxu0
      %v644 = vadd.f32 %v533, %v639
      %v645 = vpack.c.bf16 %v326, %v326
      %s646 = scalar_lea.vmem [#allocation9], 192
      %v647 = vld [vmem:[%s646] sm:$0xf]
      %v648 = vld [vmem:[%s646 + $0x4] sm:$0xf]
      %v649 = vld [vmem:[%s646 + $0x8] sm:$0xf]
      %v650 = vld [vmem:[%s646 + $0xc] sm:$0xf]
      %v651 = vld [vmem:[%s646 + $0x10] sm:$0xf]
      %v652 = vld [vmem:[%s646 + $0x14] sm:$0xf]
      %v653 = vld [vmem:[%s646 + $0x18] sm:$0xf]
      %v654 = vld [vmem:[%s646 + $0x1c] sm:$0xf]
      %v655 = vld [vmem:[%s646 + $0x20] sm:$0xf]
      %v656 = vld [vmem:[%s646 + $0x24] sm:$0xf]
      %v657 = vld [vmem:[%s646 + $0x28] sm:$0xf]
      %v658 = vld [vmem:[%s646 + $0x2c] sm:$0xf]
      %v659 = vld [vmem:[%s646 + $0x30] sm:$0xf]
      %v660 = vld [vmem:[%s646 + $0x34] sm:$0xf]
      %v661 = vld [vmem:[%s646 + $0x38] sm:$0xf]
      %v662 = vld [vmem:[%s646 + $0x3c] sm:$0xf]
      %v679 = vunpack.c.l.b16 %v647
      %v680 = vunpack.c.l.b16 %v648
      %v681 = vunpack.c.l.b16 %v649
      %v682 = vunpack.c.l.b16 %v650
      %v683 = vunpack.c.l.b16 %v651
      %v684 = vunpack.c.l.b16 %v652
      %v685 = vunpack.c.l.b16 %v653
      %v686 = vunpack.c.l.b16 %v654
      %v687 = vunpack.c.l.b16 %v655
      %v688 = vunpack.c.l.b16 %v656
      %v689 = vunpack.c.l.b16 %v657
      %v690 = vunpack.c.l.b16 %v658
      %v691 = vunpack.c.l.b16 %v659
      %v692 = vunpack.c.l.b16 %v660
      %v693 = vunpack.c.l.b16 %v661
      %v694 = vunpack.c.l.b16 %v662
      %v695 = vpack.c.b16 %v680, %v679
      %v696 = vpack.c.b16 %v682, %v681
      %v697 = vpack.c.b16 %v684, %v683
      %v698 = vpack.c.b16 %v686, %v685
      %v699 = vpack.c.b16 %v688, %v687
      %v700 = vpack.c.b16 %v690, %v689
      %v701 = vpack.c.b16 %v692, %v691
      %v702 = vpack.c.b16 %v694, %v693
      %711 = vmatprep.subr.bf16.mxu0 0
      %712 = vmatpush1.bf16.msra.mxu0 %v695
      %713 = vmatprep.subr.bf16.mxu0 0
      %714 = vmatpush1.bf16.msra.mxu0 %v696
      %715 = vmatprep.subr.bf16.mxu0 0
      %716 = vmatpush1.bf16.msra.mxu0 %v697
      %717 = vmatprep.subr.bf16.mxu0 0
      %718 = vmatpush1.bf16.msra.mxu0 %v698
      %719 = vmatprep.subr.bf16.mxu0 0
      %720 = vmatpush1.bf16.msra.mxu0 %v699
      %721 = vmatprep.subr.bf16.mxu0 0
      %722 = vmatpush1.bf16.msra.mxu0 %v700
      %723 = vmatprep.subr.bf16.mxu0 0
      %724 = vmatpush1.bf16.msra.mxu0 %v701
      %725 = vmatprep.subr.bf16.mxu0 0
      %726 = vmatpush1.bf16.msra.mxu0 %v702
      %727 = vmatprep.subr.bf16.mxu0 0
      %728 = vmatpush1.bf16.msra.mxu0 0
      %729 = vmatprep.subr.bf16.mxu0 0
      %730 = vmatpush1.bf16.msra.mxu0 0
      %731 = vmatprep.subr.bf16.mxu0 0
      %732 = vmatpush1.bf16.msra.mxu0 0
      %733 = vmatprep.subr.bf16.mxu0 0
      %734 = vmatpush1.bf16.msra.mxu0 0
      %735 = vmatprep.subr.bf16.mxu0 0
      %736 = vmatpush1.bf16.msra.mxu0 0
      %737 = vmatprep.subr.bf16.mxu0 0
      %738 = vmatpush1.bf16.msra.mxu0 0
      %739 = vmatprep.subr.bf16.mxu0 0
      %740 = vmatpush1.bf16.msra.mxu0 0
      %741 = vmatprep.subr.bf16.mxu0 0
      %742 = vmatpush1.bf16.msra.mxu0 0
      %743 = vmatprep.mubr.bf16.mxu0 0
      %744 = vmatmul.mubr.bf16.gmra.mrb[0].mxu0 %v645
      %v745 = vpop.f32.mrb[0].mxu0
      %v746 = vadd.f32 0.0, %v745
      %v747 = vpop.f32.mrb[0].mxu0
      %v748 = vpop.f32.mrb[0].mxu0
      %v749 = vpop.f32.mrb[0].mxu0
      %750 = vdwg.mxu0
      %v751 = vadd.f32 %v644, %v746
      %v752 = vld [vmem:[%s5] sm:$0x1]
      %v754 = vlaneseq
      %v755 = vshrl.u32 %v754, 7
      %v756 = vsub.s32 0, %v755
      %v757 = vrot.slane %v752, %v756
      %v759 = vadd.f32 %v751, %v757
      %760 = vst [vmem:[#allocation11] sm:$0x3] %v759
    $region49: #{tpu_custom_call.1} parent=1 // pred_fallthru
      _
    // Predicated region
    $region50: #{tpu_custom_call.1} parent=1 // pred_check
      _
    $region51: #{tpu_custom_call.1} parent=1 // pred_check_branch
      %762 = sbr.rel (0) target = $region53
    $region52: #{tpu_custom_call.1} parent=1 // pred_region
      %s764 = ssub.s32 32, 32
      %765 = vsyncadd [#allocation5], %s764
      %s767 = sshll.u32 [#allocation11], 4
      %s768 = int_to_ptr.vmem [resolvable:$true] %s767
      %770 = dma.vmem_to_hbm [thread:$0]  %s768, 32, %s6, [#allocation5]
    $region53: #{tpu_custom_call.1} parent=1 // pred_fallthru
      _
    // Predicated region
    $region54: #{tpu_custom_call.1} parent=1 // pred_check
      _
    $region55: #{tpu_custom_call.1} parent=1 // pred_check_branch
      %772 = sbr.rel (0) target = $region57
    $region56: #{tpu_custom_call.1} parent=1 // pred_region
      %773 = dma.done [#allocation5], 32
    $region57: #{tpu_custom_call.1} parent=1 // pred_fallthru
      _
    %774 = vsyncpa [#allocation4], 1
    %775 = vsyncpa [#allocation7], 1
    %776 = vsyncpa [#allocation10], 1
    %777 = vsyncpa [#allocation5], 1

</llo_original>
